<compile_context>
chip_gen: v7x
topology: tpu7x:2x2x1
jax: 0.10.0
libtpu: 0.0.40
codegen_flags: <defaults>
</compile_context>

<pallas_src>
import jax
import jax.numpy as jnp
from jax.experimental import pallas as pl
from jax.experimental.pallas import tpu as pltpu


def _mlp_out1_kernel(x_ref, w1_ref, b1_ref, w2_ref, b2_ref, o_ref):
    """Fused MLP for output_size == 1.

    x_ref  : (Bt, IN)   f32 VMEM
    w1_ref : (IN, HID)  f32 VMEM  (resident across grid steps)
    b1_ref : (1, HID)   f32 VMEM
    w2_ref : (1, HID)   f32 VMEM
    b2_ref : (1, 1)     f32 SMEM
    o_ref  : (Bt, 1)    f32 VMEM
    """
    # fc1 on the MXU (contraction dim padded internally), bias + ReLU on the VPU.
    h = jnp.dot(x_ref[...], w1_ref[...], preferred_element_type=jnp.float32)
    h = jnp.maximum(h + b1_ref[...], 0.0)
    # fc3 with N=1: VPU multiply + lane reduce — avoids the MXU round trip.
    z = jnp.sum(h * w2_ref[...], axis=-1, keepdims=True) + b2_ref[0, 0]
    o_ref[...] = jax.nn.sigmoid(z).astype(o_ref.dtype)


def _mlp_general_kernel(x_ref, w1_ref, b1_ref, w2_ref, b2_ref, o_ref):
    """Fused MLP, general output_size (fallback path when out_dim > 1)."""
    h = jnp.dot(x_ref[...], w1_ref[...], preferred_element_type=jnp.float32)
    h = jnp.maximum(h + b1_ref[...], 0.0)
    z = jnp.dot(h, w2_ref[...], preferred_element_type=jnp.float32) + b2_ref[...]
    o_ref[...] = jax.nn.sigmoid(z).astype(o_ref.dtype)


def prepare_params(w1, b1, w2, b2):
    """One-time parameter preparation (model init, NOT per forward call).

    w1: (hidden, in), b1: (hidden,), w2: (out, hidden), b2: (out,)
    (PyTorch nn.Linear conventions).
    """
    hidden, _ = w1.shape
    out_dim = w2.shape[0]

    params = {
        "w1": jnp.transpose(w1).astype(jnp.float32),       # (in, hidden)
        "b1": b1.astype(jnp.float32).reshape(1, hidden),    # (1, hidden) VMEM row
    }
    if out_dim == 1:
        params["w2"] = w2.astype(jnp.float32).reshape(1, hidden)  # row for VPU reduce
        params["b2"] = b2.astype(jnp.float32).reshape(1, 1)       # SMEM scalar
    else:
        params["w2"] = jnp.transpose(w2).astype(jnp.float32)      # (hidden, out)
        params["b2"] = b2.astype(jnp.float32).reshape(1, out_dim) # VMEM row
    return params


def _pick_batch_tile(B):
    """Row tile for the batch grid axis. Full array for small B; otherwise a
    large divisor so the grid pipelines HBM->VMEM (>=512 rows ~ 85% roofline)."""
    if B <= 512:
        return B
    for t in (1024, 512, 256, 128):
        if B % t == 0:
            return t
    return B  # odd batch: single full-array block


@jax.jit
def _forward(x, w1, b1, w2, b2):
    B, in_dim = x.shape
    hidden = w1.shape[1]
    out_dim = b2.shape[1]

    tile_b = _pick_batch_tile(B)
    grid = (B // tile_b,)

    # Weights/biases: constant block index -> stay resident in VMEM across steps.
    const2 = lambda shape: pl.BlockSpec(shape, lambda i: (0, 0))
    x_spec = pl.BlockSpec((tile_b, in_dim), lambda i: (i, 0))
    out_spec = pl.BlockSpec((tile_b, out_dim), lambda i: (i, 0))

    if out_dim == 1:
        kernel = _mlp_out1_kernel
        w2_spec = const2((1, hidden))
        b2_spec = pl.BlockSpec(memory_space=pltpu.MemorySpace.SMEM)
    else:
        kernel = _mlp_general_kernel
        w2_spec = const2((hidden, out_dim))
        b2_spec = const2((1, out_dim))

    return pl.pallas_call(
        kernel,
        out_shape=jax.ShapeDtypeStruct((B, out_dim), x.dtype),
        grid_spec=pltpu.PrefetchScalarGridSpec(
            num_scalar_prefetch=0,
            grid=grid,
            in_specs=[
                x_spec,                     # raw x, no wrapper-side padding
                const2((in_dim, hidden)),   # w1^T
                const2((1, hidden)),        # b1
                w2_spec,
                b2_spec,
            ],
            out_specs=out_spec,
        ),
        compiler_params=pltpu.CompilerParams(
            # Batch axis is independent -> shard across v7x's 2 TCs; free on v5e/v6e.
            dimension_semantics=("parallel",),
        ),
    )(x, w1, b1, w2, b2)


def three_layer_classifier(x, params):
    """Forward pass: x (B, in) -> (B, out)."""
    return _forward(x, params["w1"], params["b1"], params["w2"], params["b2"])


def _reference(x, w1, b1, w2, b2):
    h = jnp.maximum(x @ w1.T + b1, 0.0)
    return jax.nn.sigmoid(h @ w2.T + b2)


if __name__ == "__main__":
    # Small shapes consistent with the fight-detector usage:
    # input_size=34 (pose features), hidden_size1=32, output_size=1, batch=8.
    B, IN, HID, OUT = 8, 34, 32, 1

    key = jax.random.PRNGKey(0)
    kx, k1, k2, k3, k4 = jax.random.split(key, 5)

    # Deterministic parameter init mimicking nn.Linear default (U(-1/sqrt(fan_in), +)).
    bound1 = 1.0 / jnp.sqrt(IN)
    bound2 = 1.0 / jnp.sqrt(HID)
    x = jax.random.normal(kx, (B, IN), dtype=jnp.float32)
    w1 = jax.random.uniform(k1, (HID, IN), minval=-bound1, maxval=bound1, dtype=jnp.float32)
    b1 = jax.random.uniform(k2, (HID,), minval=-bound1, maxval=bound1, dtype=jnp.float32)
    w2 = jax.random.uniform(k3, (OUT, HID), minval=-bound2, maxval=bound2, dtype=jnp.float32)
    b2 = jax.random.uniform(k4, (OUT,), minval=-bound2, maxval=bound2, dtype=jnp.float32)

    # One-time parameter prep (hoisted out of the forward path).
    params = prepare_params(w1, b1, w2, b2)
    params = jax.tree_util.tree_map(jax.block_until_ready, params)

    out = three_layer_classifier(x, params)
    out = jax.block_until_ready(out)

    ref = _reference(x, w1, b1, w2, b2)
    assert out.shape == (B, OUT)
    assert jnp.allclose(out, ref, atol=1e-5, rtol=1e-5), "mismatch vs reference"

    print("KERNEL_OK")
</pallas_src>

<mosaic_0001>
module attributes {stable_mosaic.version = 11 : i64} {
  func.func @_mlp_out1_kernel(%arg0: i32, %arg1: memref<8x34xf32, #tpu.memory_space<vmem>>, %arg2: memref<34x32xf32, #tpu.memory_space<vmem>>, %arg3: memref<1x32xf32, #tpu.memory_space<vmem>>, %arg4: memref<1x32xf32, #tpu.memory_space<vmem>>, %arg5: memref<1x1xf32, #tpu.memory_space<smem>>, %arg6: memref<8x1xf32, #tpu.memory_space<vmem>>) attributes {dimension_semantics = [#tpu.dimension_semantics<parallel>], iteration_bounds = array<i64: 1>, scalar_prefetch = 0 : i64, scratch_operands = 0 : i64, tpu.core_type = #tpu.core_type<tc>, window_params = [{transform_indices = @transform_0, window_bounds = array<i64: 8, 34>}, {pipeline_mode = #tpu.pipeline_mode<synchronous>, transform_indices = @transform_1, window_bounds = array<i64: 34, 32>}, {pipeline_mode = #tpu.pipeline_mode<synchronous>, transform_indices = @transform_2, window_bounds = array<i64: 1, 32>}, {pipeline_mode = #tpu.pipeline_mode<synchronous>, transform_indices = @transform_3, window_bounds = array<i64: 1, 32>}, {transform_indices = @transform_4, window_bounds = array<i64: 1, 1>}, {transform_indices = @transform_5, window_bounds = array<i64: 8, 1>}]} {
    %c0 = arith.constant 0 : index
    %c0_0 = arith.constant 0 : index
    %0 = vector.load %arg1[%c0, %c0_0] : memref<8x34xf32, #tpu.memory_space<vmem>>, vector<8x34xf32>
    %c0_1 = arith.constant 0 : index
    %c0_2 = arith.constant 0 : index
    %1 = vector.load %arg2[%c0_1, %c0_2] : memref<34x32xf32, #tpu.memory_space<vmem>>, vector<34x32xf32>
    %cst = arith.constant dense<0.000000e+00> : vector<8x32xf32>
    %2 = tpu.matmul %0, %1, %cst {dimension_numbers = #tpu.dot_dimension_numbers<[1], [0], [0], [1], [0, 0, 1, 1], [], []>} : vector<8x34xf32>, vector<34x32xf32>, vector<8x32xf32> -> vector<8x32xf32>
    %c0_3 = arith.constant 0 : index
    %c0_4 = arith.constant 0 : index
    %3 = vector.load %arg3[%c0_3, %c0_4] : memref<1x32xf32, #tpu.memory_space<vmem>>, vector<1x32xf32>
    %4 = vector.broadcast %3 : vector<1x32xf32> to vector<8x32xf32>
    %5 = arith.addf %2, %4 : vector<8x32xf32>
    %cst_5 = arith.constant 0.000000e+00 : f32
    %6 = vector.broadcast %cst_5 : f32 to vector<8x32xf32>
    %7 = arith.maximumf %5, %6 : vector<8x32xf32>
    %c0_6 = arith.constant 0 : index
    %c0_7 = arith.constant 0 : index
    %8 = vector.load %arg4[%c0_6, %c0_7] : memref<1x32xf32, #tpu.memory_space<vmem>>, vector<1x32xf32>
    %9 = vector.broadcast %8 : vector<1x32xf32> to vector<8x32xf32>
    %10 = arith.mulf %7, %9 : vector<8x32xf32>
    %cst_8 = arith.constant dense<0.000000e+00> : vector<8xf32>
    %11 = vector.multi_reduction <add>, %10, %cst_8 [1] : vector<8x32xf32> to vector<8xf32>
    %12 = vector.shape_cast %11 : vector<8xf32> to vector<8x1xf32>
    %c0_9 = arith.constant 0 : index
    %c0_10 = arith.constant 0 : index
    %13 = memref.load %arg5[%c0_9, %c0_10] : memref<1x1xf32, #tpu.memory_space<smem>>
    %14 = vector.broadcast %13 : f32 to vector<8x1xf32>
    %15 = arith.addf %12, %14 : vector<8x1xf32>
    %16 = arith.negf %15 : vector<8x1xf32>
    %17 = math.exp %16 : vector<8x1xf32>
    %cst_11 = arith.constant 1.000000e+00 : f32
    %18 = vector.broadcast %cst_11 : f32 to vector<8x1xf32>
    %19 = arith.addf %18, %17 : vector<8x1xf32>
    %20 = arith.divf %18, %19 : vector<8x1xf32>
    %c0_12 = arith.constant 0 : index
    %c0_13 = arith.constant 0 : index
    %21 = vector.load %arg6[%c0_12, %c0_13] : memref<8x1xf32, #tpu.memory_space<vmem>>, vector<8x1xf32>
    tpu.vector_store %arg6[%c0_12, %c0_13], %20 {strides = array<i32>} : memref<8x1xf32, #tpu.memory_space<vmem>>, vector<8x1xf32>,
    return
  }
  func.func @transform_0(%arg0: i32) -> (i32, i32) {
    %c0_i32 = arith.constant 0 : i32
    %c0_i32_0 = arith.constant 0 : i32
    return %arg0, %c0_i32 : i32, i32
  }
  func.func @transform_1(%arg0: i32) -> (i32, i32) {
    %c0_i32 = arith.constant 0 : i32
    %c0_i32_0 = arith.constant 0 : i32
    %c0_i32_1 = arith.constant 0 : i32
    return %c0_i32, %c0_i32_0 : i32, i32
  }
  func.func @transform_2(%arg0: i32) -> (i32, i32) {
    %c0_i32 = arith.constant 0 : i32
    %c0_i32_0 = arith.constant 0 : i32
    %c0_i32_1 = arith.constant 0 : i32
    return %c0_i32, %c0_i32_0 : i32, i32
  }
  func.func @transform_3(%arg0: i32) -> (i32, i32) {
    %c0_i32 = arith.constant 0 : i32
    %c0_i32_0 = arith.constant 0 : i32
    %c0_i32_1 = arith.constant 0 : i32
    return %c0_i32, %c0_i32_0 : i32, i32
  }
  func.func @transform_4(%arg0: i32) -> (i32, i32) {
    %c0_i32 = arith.constant 0 : i32
    %c0_i32_0 = arith.constant 0 : i32
    %c0_i32_1 = arith.constant 0 : i32
    return %c0_i32, %c0_i32_0 : i32, i32
  }
  func.func @transform_5(%arg0: i32) -> (i32, i32) {
    %c0_i32 = arith.constant 0 : i32
    %c0_i32_0 = arith.constant 0 : i32
    return %arg0, %c0_i32 : i32, i32
  }
}

</mosaic_0001>

<llo_original>
// kernel: _forward.1
$region0: #{_forward.1}
  #allocation0 [shape = 'u32[]', space=smem, size = 0x4, offset = 0x4, fixed_abs, tag = 'smem constant byte address 0x4 - core index']
  #allocation1 [shape = 'u32[144,128]{1,0:T(1,128)}', space=vmem, size = 0x12000, scoped, tag = 'internal scratch']
  #allocation2 [shape = 'f32[1,1]{1,0:T(1,128)S(6)}', space=smem, size = 0x200, scoped, tag = 'scoped memory for _forward.1']
  %s0 = inlined_call_operand.vmem [shape: f32[8,34], index: 0, kind: input, shape index: {}]
  %s1 = inlined_call_operand.vmem [shape: f32[34,32], index: 1, kind: input, shape index: {}]
  %s2 = inlined_call_operand.vmem [shape: f32[1,32], index: 2, kind: input, shape index: {}]
  %s3 = inlined_call_operand.vmem [shape: f32[1,32], index: 3, kind: input, shape index: {}]
  %s4 = inlined_call_operand.<no memory space> [shape: f32[1,1], index: 4, kind: input, shape index: {}]
  %s5 = inlined_call_operand.vmem [shape: f32[8,1], index: 5, kind: output, shape index: {}]
  %s6 = sld [smem:[#allocation0]]
  $region30: #{_forward.1} parent=0
    _
  %s8 = ssub.s32 1, %s6
  %s9 = scalar_select 0, %s8, %s6
  %10 = sst [smem:[#allocation2]] %s4
  // Predicated region
  $region2: #{_forward.1} parent=0 // pred_check
    _
  $region3: #{_forward.1} parent=0 // pred_check_branch
    %12 = sbr.rel (0) target = $region5
  $region4: #{_forward.1} parent=0 // pred_region
    _
  $region5: #{_forward.1} parent=0 // pred_fallthru
    _
  // Predicated region
  $region6: #{_forward.1} parent=0 // pred_check
    _
  $region7: #{_forward.1} parent=0 // pred_check_branch
    %14 = sbr.rel (0) target = $region9
  $region8: #{_forward.1} parent=0 // pred_region
    _
  $region9: #{_forward.1} parent=0 // pred_fallthru
    _
  // Predicated region
  $region10: #{_forward.1} parent=0 // pred_check
    _
  $region11: #{_forward.1} parent=0 // pred_check_branch
    %16 = sbr.rel (0) target = $region13
  $region12: #{_forward.1} parent=0 // pred_region
    _
  $region13: #{_forward.1} parent=0 // pred_fallthru
    _
  // Predicated region
  $region14: #{_forward.1} parent=0 // pred_check
    _
  $region15: #{_forward.1} parent=0 // pred_check_branch
    %18 = sbr.rel (0) target = $region17
  $region16: #{_forward.1} parent=0 // pred_region
    _
  $region17: #{_forward.1} parent=0 // pred_fallthru
    _
  // Predicated region
  $region18: #{_forward.1} parent=0 // pred_check
    _
  $region19: #{_forward.1} parent=0 // pred_check_branch
    %20 = sbr.rel (0) target = $region21
  $region20: #{_forward.1} parent=0 // pred_region
    _
  $region21: #{_forward.1} parent=0 // pred_fallthru
    _
  %v21 = vld [vmem:[%s0] sm:$0xff]
  %v22 = vld [vmem:[%s1] sm:$0xff]
  %v23 = vld [vmem:[%s1 + $0x8] sm:$0xff]
  %v24 = vld [vmem:[%s1 + $0x10] sm:$0xff]
  %v25 = vld [vmem:[%s1 + $0x18] sm:$0xff]
  %v26 = vld [vmem:[%s1 + $0x20] sm:$0x3]
  %v27 = vld [vmem:[%s2] sm:$0x1]
  %v29 = vlaneseq
  %v30 = vshrl.u32 %v29, 7
  %v31 = vsub.s32 0, %v30
  %v32 = vrot.slane %v27, %v31
  %vm34 = vcmask 277504
  %v36 = vsel %vm34, %v21, 0
  %vm38 = vcmask 1041408
  %v40 = vsel %vm38, %v26, 0
  %42 = vmatprep.subr.mxu0 0.0
  %43 = vmatpush1.msra.mxu0 %v22
  %44 = vmatprep.subr.mxu0 0.0
  %45 = vmatpush1.msra.mxu0 %v23
  %46 = vmatprep.subr.mxu0 0.0
  %47 = vmatpush1.msra.mxu0 %v24
  %48 = vmatprep.subr.mxu0 0.0
  %49 = vmatpush1.msra.mxu0 %v25
  %50 = vmatprep.subr.mxu0 0.0
  %51 = vmatpush1.msra.mxu0 %v40
  %52 = vmatprep.subr.mxu0 0.0
  %53 = vmatpush1.msra.mxu0 0.0
  %54 = vmatprep.subr.mxu0 0.0
  %55 = vmatpush1.msra.mxu0 0.0
  %56 = vmatprep.subr.mxu0 0.0
  %57 = vmatpush1.msra.mxu0 0.0
  %58 = vmatprep.subr.mxu0 0.0
  %59 = vmatpush1.msra.mxu0 0.0
  %60 = vmatprep.subr.mxu0 0.0
  %61 = vmatpush1.msra.mxu0 0.0
  %62 = vmatprep.subr.mxu0 0.0
  %63 = vmatpush1.msra.mxu0 0.0
  %64 = vmatprep.subr.mxu0 0.0
  %65 = vmatpush1.msra.mxu0 0.0
  %66 = vmatprep.subr.mxu0 0.0
  %67 = vmatpush1.msra.mxu0 0.0
  %68 = vmatprep.subr.mxu0 0.0
  %69 = vmatpush1.msra.mxu0 0.0
  %70 = vmatprep.subr.mxu0 0.0
  %71 = vmatpush1.msra.mxu0 0.0
  %72 = vmatprep.subr.mxu0 0.0
  %73 = vmatpush1.msra.mxu0 0.0
  %74 = vmatprep.subr.mxu0 0.0
  %75 = vmatpush1.msra.mxu0 0.0
  %76 = vmatprep.subr.mxu0 0.0
  %77 = vmatpush1.msra.mxu0 0.0
  %78 = vmatprep.subr.mxu0 0.0
  %79 = vmatpush1.msra.mxu0 0.0
  %80 = vmatprep.subr.mxu0 0.0
  %81 = vmatpush1.msra.mxu0 0.0
  %82 = vmatprep.subr.mxu0 0.0
  %83 = vmatpush1.msra.mxu0 0.0
  %84 = vmatprep.subr.mxu0 0.0
  %85 = vmatpush1.msra.mxu0 0.0
  %86 = vmatprep.subr.mxu0 0.0
  %87 = vmatpush1.msra.mxu0 0.0
  %88 = vmatprep.subr.mxu0 0.0
  %89 = vmatpush1.msra.mxu0 0.0
  %90 = vmatprep.subr.mxu0 0.0
  %91 = vmatpush1.msra.mxu0 0.0
  %92 = vmatprep.subr.mxu0 0.0
  %93 = vmatpush1.msra.mxu0 0.0
  %94 = vmatprep.subr.mxu0 0.0
  %95 = vmatpush1.msra.mxu0 0.0
  %96 = vmatprep.subr.mxu0 0.0
  %97 = vmatpush1.msra.mxu0 0.0
  %98 = vmatprep.subr.mxu0 0.0
  %99 = vmatpush1.msra.mxu0 0.0
  %100 = vmatprep.subr.mxu0 0.0
  %101 = vmatpush1.msra.mxu0 0.0
  %102 = vmatprep.subr.mxu0 0.0
  %103 = vmatpush1.msra.mxu0 0.0
  %104 = vmatprep.subr.mxu0 0.0
  %105 = vmatpush1.msra.mxu0 0.0
  %106 = vmatprep.mubr.f32.mxu0 0.0
  %107 = vmatmul.mubr.f32.gmra.mrb[0].mxu0 %v36
  %v108 = vpop.f32.mrb[0].mxu0
  %v109 = vadd.f32 %v32, %v108
  %v110 = vpop.f32.mrb[0].mxu0
  %111 = vdwg.mxu0
  %v112 = vmax.f32 %v109, 0.0
  %v113 = vld [vmem:[%s3] sm:$0x1]
  %v115 = vlaneseq
  %v116 = vshrl.u32 %v115, 7
  %v117 = vsub.s32 0, %v116
  %v118 = vrot.slane %v113, %v117
  %v120 = vmul.f32 %v112, %v118
  %vm121 = vcmask 261120
  %v122 = vsel %vm121, %v120, 0.0
  %123 = vadd.xlane.f32.xlu0 %v122
  %v124 = vpop.xlane.xlu0 %123
  %s125 = sld [smem:[#allocation2]]
  %v126 = vstv %s125
  %v127 = vadd.f32 %v124, %v126
  %v128 = vxor.u32 %v127, 2147483648
  %v129 = vmul.f32 %v128, 1.442695
  %v130 = vpow.pop %v129
  %v131 = vadd.f32 %v130, 1.0
  %v132 = vrcp.pop %v131
  %v133 = vmul.f32 1.0, %v132
  %vm134 = vcmask 7168
  %135 = vst.msk [vmem:[%s5] sm:$0xff] %vm134, %v133
  // Predicated region
  $region22: #{_forward.1} parent=0 // pred_check
    _
  $region23: #{_forward.1} parent=0 // pred_check_branch
    %137 = sbr.rel (0) target = $region25
  $region24: #{_forward.1} parent=0 // pred_region
    _
  $region25: #{_forward.1} parent=0 // pred_fallthru
    _
  // Predicated region
  $region26: #{_forward.1} parent=0 // pred_check
    _
  $region27: #{_forward.1} parent=0 // pred_check_branch
    %139 = sbr.rel (0) target = $region29
  $region28: #{_forward.1} parent=0 // pred_region
    _
  $region29: #{_forward.1} parent=0 // pred_fallthru
    _

</llo_original>
